<compile_context>
chip_gen: v6e
topology: v6e:2x2x1
jax: 0.10.0
libtpu: 0.0.40
codegen_flags: <defaults>
</compile_context>

<pallas_src>
import functools

import jax
import jax.numpy as jnp
from jax import lax
from jax.experimental import pallas as pl
from jax.experimental.pallas import tpu as pltpu


# ----------------------------- Pallas kernel -------------------------------

def _conv_in_kernel(p_ref, w_ref, c_ref, *rest,
                    eps, use_norm, apply_relu, add_residual):
    # p_ref  : (1, K_pad, P)   bf16 im2col patches for one sample (P = Ho*Wo on lanes)
    # w_ref  : (C_out, K_pad)  bf16 flattened conv weight (zero-padded K tail)
    # c_ref  : (C_out, 3)      f32 packed per-channel constants [bias | gamma | beta]
    # [res_ref]: (1, C_out, P) residual to add (optional)
    # o_ref  : (1, C_out, P)
    if add_residual:
        res_ref, o_ref = rest
    else:
        (o_ref,) = rest

    # (C_out, K) @ (K, P) -> (C_out, P) on the MXU, f32 accumulation. Single block:
    # no K grid axis, no accumulator scratch, no pl.when init/finalize.
    y = jnp.dot(w_ref[...], p_ref[0], preferred_element_type=jnp.float32)

    if use_norm:
        # Conv bias cancels exactly under instance norm -> never added.
        # Stats over the full, *unpadded* P axis (P == Ho*Wo exactly by construction).
        mean = jnp.mean(y, axis=1, keepdims=True)               # (C_out, 1)
        centered = y - mean
        var = jnp.mean(centered * centered, axis=1, keepdims=True)
        scale = c_ref[:, 1:2] * lax.rsqrt(var + eps)            # gamma * rsqrt(var+eps)
        y = centered * scale + c_ref[:, 2:3]                    # + beta
    else:
        y = y + c_ref[:, 0:1]                                   # + bias
    if apply_relu:
        y = jnp.maximum(y, 0.0)
    if add_residual:
        y = y + res_ref[0].astype(jnp.float32)
    o_ref[0] = y.astype(o_ref.dtype)                            # unmasked lane-dense store


# ------------------------------ JAX wrapper ---------------------------------

def _im2col_kp(xp, k, stride):
    """xp: (N, C, Hp, Wp) padded input -> patches (N, C*k*k, Ho*Wo) [matmul-ready]."""
    N, C, Hp, Wp = xp.shape
    Ho = (Hp - k) // stride + 1
    Wo = (Wp - k) // stride + 1
    cols = []
    for di in range(k):
        for dj in range(k):
            cols.append(xp[:, :, di:di + stride * Ho:stride,
                              dj:dj + stride * Wo:stride])      # (N, C, Ho, Wo)
    p = jnp.stack(cols, axis=2)                                 # (N, C, k*k, Ho, Wo)
    # K index = c*k*k + di*k + dj  (matches weight.reshape(C_out, C_in*k*k)).
    # Both reshape merges are of adjacent contiguous axes -> no HBM transpose.
    return p.reshape(N, C * k * k, Ho * Wo), Ho, Wo             # (N, K, P)


def conv_layer_forward(x, weight, bias, gamma=None, beta=None, *, kernel_size,
                       stride=1, norm="instance", eps=1e-5, apply_relu=False,
                       residual=None, out_dtype=None):
    """ConvLayer forward. x: (N, C_in, H, W). weight: (C_out, C_in, k, k)."""
    if norm not in ("instance", "None", None):
        # TODO(synk): norm='batch' (BatchNorm2d) not implemented.
        raise NotImplementedError(f"norm={norm!r} is not supported by this kernel")
    use_norm = norm == "instance"

    N, C_in, H, W = x.shape
    C_out = weight.shape[0]
    pad = kernel_size // 2
    out_dtype = x.dtype if out_dtype is None else out_dtype

    # Reflection pad + im2col (wrapper glue; see in-kernel TODOs at file top).
    xp = jnp.pad(x, ((0, 0), (0, 0), (pad, pad), (pad, pad)), mode="reflect")
    patches, Ho, Wo = _im2col_kp(xp, kernel_size, stride)       # (N, K, P)
    P = Ho * Wo
    K = C_in * kernel_size * kernel_size

    patches = patches.astype(jnp.bfloat16)
    w_mat = weight.reshape(C_out, K).astype(jnp.bfloat16)

    # Zero-pad K to a 128 multiple for MXU alignment (no K grid axis; contributions = 0).
    K_pad = ((K + 127) // 128) * 128
    if K_pad != K:
        patches = jnp.pad(patches, ((0, 0), (0, K_pad - K), (0, 0)))
        w_mat = jnp.pad(w_mat, ((0, 0), (0, K_pad - K)))

    # Pack per-channel constants into a single (C_out, 3) array: [bias, gamma, beta].
    if gamma is None:
        gamma = jnp.ones((C_out,), jnp.float32)
    if beta is None:
        beta = jnp.zeros((C_out,), jnp.float32)
    consts = jnp.stack([bias.astype(jnp.float32),
                        gamma.astype(jnp.float32),
                        beta.astype(jnp.float32)], axis=1)      # (C_out, 3)

    add_residual = residual is not None

    in_specs = [
        pl.BlockSpec((1, K_pad, P), lambda n: (n, 0, 0)),
        pl.BlockSpec((C_out, K_pad), lambda n: (0, 0)),
        pl.BlockSpec((C_out, 3), lambda n: (0, 0)),
    ]
    args = [patches, w_mat, consts]
    if add_residual:
        # NCHW identity -> (N, C_out, P): contiguous reshape, no transpose.
        res_mat = residual.reshape(N, C_out, P)
        in_specs.append(pl.BlockSpec((1, C_out, P), lambda n: (n, 0, 0)))
        args.append(res_mat)

    # Right-size the VMEM request from the actual per-step block bytes (x4 for
    # double-buffering + epilogue headroom), capped below v7x's 64 MiB physical VMEM.
    block_bytes = (K_pad * P * 2                                # patches (bf16)
                   + C_out * K_pad * 2                          # weight (bf16)
                   + C_out * 128 * 4                            # consts (padded tile)
                   + (C_out * P * 4 if add_residual else 0)     # residual
                   + C_out * P * jnp.dtype(out_dtype).itemsize) # output
    vmem_limit = int(min(48 * 1024 * 1024, max(8 * 1024 * 1024, 4 * block_bytes)))

    kernel = functools.partial(_conv_in_kernel, eps=eps, use_norm=use_norm,
                               apply_relu=apply_relu, add_residual=add_residual)

    out_mat = pl.pallas_call(
        kernel,
        out_shape=jax.ShapeDtypeStruct((N, C_out, P), out_dtype),
        grid_spec=pltpu.PrefetchScalarGridSpec(
            num_scalar_prefetch=0,
            grid=(N,),
            in_specs=in_specs,
            out_specs=pl.BlockSpec((1, C_out, P), lambda n: (n, 0, 0)),
        ),
        compiler_params=pltpu.CompilerParams(
            dimension_semantics=("parallel",),
            vmem_limit_bytes=vmem_limit,
        ),
    )(*args)

    # Output is already (N, C_out, P): NCHW falls out with a plain reshape.
    return out_mat.reshape(N, C_out, Ho, Wo)


def residual_layer_forward(x, p, *, kernel_size=3, eps=1e-5):
    """ResidualLayer forward: relu(IN(conv1(x))) -> IN(conv2(.)) -> + x."""
    # conv1 emits bf16 directly: its output only feeds conv2's bf16 matmul operands,
    # so this halves the intermediate HBM traffic with identical numerics.
    out = conv_layer_forward(x, p["w1"], p["b1"], p["g1"], p["be1"],
                             kernel_size=kernel_size, stride=1, norm="instance",
                             eps=eps, apply_relu=True, out_dtype=jnp.bfloat16)
    out = conv_layer_forward(out, p["w2"], p["b2"], p["g2"], p["be2"],
                             kernel_size=kernel_size, stride=1, norm="instance",
                             eps=eps, residual=x, out_dtype=x.dtype)
    return out


# ---------------------------- pure-JAX reference ----------------------------

def _conv_layer_ref(x, w, b, g, be, *, k, stride=1, eps=1e-5):
    pad = k // 2
    xp = jnp.pad(x, ((0, 0), (0, 0), (pad, pad), (pad, pad)), mode="reflect")
    # Same bf16 operand / f32 accumulation numerics as the kernel's matmul path.
    y = lax.conv_general_dilated(xp.astype(jnp.bfloat16), w.astype(jnp.bfloat16),
                                 (stride, stride), "VALID",
                                 dimension_numbers=("NCHW", "OIHW", "NCHW"),
                                 preferred_element_type=jnp.float32)
    y = y + b[None, :, None, None]
    mean = y.mean(axis=(2, 3), keepdims=True)
    var = ((y - mean) ** 2).mean(axis=(2, 3), keepdims=True)    # biased, like InstanceNorm2d
    return (y - mean) * lax.rsqrt(var + eps) * g[None, :, None, None] \
        + be[None, :, None, None]


def _residual_ref(x, p, *, k, eps=1e-5):
    out = jnp.maximum(_conv_layer_ref(x, p["w1"], p["b1"], p["g1"], p["be1"],
                                      k=k, eps=eps), 0.0)
    out = _conv_layer_ref(out, p["w2"], p["b2"], p["g2"], p["be2"], k=k, eps=eps)
    return out + x


# ---------------------------------- main -------------------------------------

if __name__ == "__main__":
    # ResidualLayer(channels, kernel_size=3) at small shapes.
    channels, kernel_size = 32, 3
    N, H, W = 2, 16, 16

    key = jax.random.PRNGKey(0)
    ks = jax.random.split(key, 9)

    x = jax.random.normal(ks[0], (N, channels, H, W), jnp.float32)
    params = {
        "w1": 0.1 * jax.random.normal(ks[1], (channels, channels, kernel_size, kernel_size), jnp.float32),
        "b1": 0.1 * jax.random.normal(ks[2], (channels,), jnp.float32),
        "g1": 1.0 + 0.1 * jax.random.normal(ks[3], (channels,), jnp.float32),
        "be1": 0.1 * jax.random.normal(ks[4], (channels,), jnp.float32),
        "w2": 0.1 * jax.random.normal(ks[5], (channels, channels, kernel_size, kernel_size), jnp.float32),
        "b2": 0.1 * jax.random.normal(ks[6], (channels,), jnp.float32),
        "g2": 1.0 + 0.1 * jax.random.normal(ks[7], (channels,), jnp.float32),
        "be2": 0.1 * jax.random.normal(ks[8], (channels,), jnp.float32),
    }

    out = residual_layer_forward(x, params, kernel_size=kernel_size)
    out = jax.block_until_ready(out)

    ref = _residual_ref(x, params, k=kernel_size)
    ref = jax.block_until_ready(ref)

    assert out.shape == (N, channels, H, W), out.shape
    assert jnp.allclose(out, ref, rtol=2e-2, atol=2e-2), float(
        jnp.max(jnp.abs(out - ref)))

    print("KERNEL_OK")
</pallas_src>

<mosaic_0001>
module attributes {stable_mosaic.version = 11 : i64} {
  func.func @_conv_in_kernel(%arg0: i32, %arg1: memref<1x384x256xbf16, #tpu.memory_space<vmem>>, %arg2: memref<32x384xbf16, #tpu.memory_space<vmem>>, %arg3: memref<32x3xf32, #tpu.memory_space<vmem>>, %arg4: memref<1x32x256xbf16, #tpu.memory_space<vmem>>) attributes {dimension_semantics = [#tpu.dimension_semantics<parallel>], iteration_bounds = array<i64: 2>, scalar_prefetch = 0 : i64, scratch_operands = 0 : i64, tpu.core_type = #tpu.core_type<tc>, window_params = [{transform_indices = @transform_0, window_bounds = array<i64: 1, 384, 256>}, {pipeline_mode = #tpu.pipeline_mode<synchronous>, transform_indices = @transform_1, window_bounds = array<i64: 32, 384>}, {pipeline_mode = #tpu.pipeline_mode<synchronous>, transform_indices = @transform_2, window_bounds = array<i64: 32, 3>}, {transform_indices = @transform_3, window_bounds = array<i64: 1, 32, 256>}]} {
    %c0 = arith.constant 0 : index
    %c0_0 = arith.constant 0 : index
    %0 = vector.load %arg2[%c0, %c0_0] : memref<32x384xbf16, #tpu.memory_space<vmem>>, vector<32x384xbf16>
    %c0_1 = arith.constant 0 : index
    %c0_2 = arith.constant 0 : index
    %c0_3 = arith.constant 0 : index
    %1 = vector.load %arg1[%c0_1, %c0_2, %c0_3] : memref<1x384x256xbf16, #tpu.memory_space<vmem>>, vector<1x384x256xbf16>
    %2 = vector.shape_cast %1 : vector<1x384x256xbf16> to vector<384x256xbf16>
    %cst = arith.constant dense<0.000000e+00> : vector<32x256xf32>
    %3 = tpu.matmul %0, %2, %cst {dimension_numbers = #tpu.dot_dimension_numbers<[1], [0], [0], [1], [0, 0, 1, 1], [], []>} : vector<32x384xbf16>, vector<384x256xbf16>, vector<32x256xf32> -> vector<32x256xf32>
    %cst_4 = arith.constant dense<0.000000e+00> : vector<32xf32>
    %4 = vector.multi_reduction <add>, %3, %cst_4 [1] : vector<32x256xf32> to vector<32xf32>
    %5 = vector.shape_cast %4 : vector<32xf32> to vector<32x1xf32>
    %cst_5 = arith.constant 2.560000e+02 : f32
    %6 = vector.broadcast %cst_5 : f32 to vector<32x1xf32>
    %7 = arith.divf %5, %6 : vector<32x1xf32>
    %8 = vector.broadcast %7 : vector<32x1xf32> to vector<32x256xf32>
    %9 = arith.subf %3, %8 : vector<32x256xf32>
    %10 = arith.mulf %9, %9 : vector<32x256xf32>
    %cst_6 = arith.constant dense<0.000000e+00> : vector<32xf32>
    %11 = vector.multi_reduction <add>, %10, %cst_6 [1] : vector<32x256xf32> to vector<32xf32>
    %12 = vector.shape_cast %11 : vector<32xf32> to vector<32x1xf32>
    %cst_7 = arith.constant 2.560000e+02 : f32
    %13 = vector.broadcast %cst_7 : f32 to vector<32x1xf32>
    %14 = arith.divf %12, %13 : vector<32x1xf32>
    %c0_8 = arith.constant 0 : index
    %c1 = arith.constant 1 : index
    %15 = vector.load %arg3[%c0_8, %c1] : memref<32x3xf32, #tpu.memory_space<vmem>>, vector<32x1xf32>
    %cst_9 = arith.constant 9.99999974E-6 : f32
    %16 = vector.broadcast %cst_9 : f32 to vector<32x1xf32>
    %17 = arith.addf %14, %16 : vector<32x1xf32>
    %18 = math.rsqrt %17 : vector<32x1xf32>
    %19 = arith.mulf %15, %18 : vector<32x1xf32>
    %20 = vector.broadcast %19 : vector<32x1xf32> to vector<32x256xf32>
    %21 = arith.mulf %9, %20 : vector<32x256xf32>
    %c0_10 = arith.constant 0 : index
    %c2 = arith.constant 2 : index
    %22 = vector.load %arg3[%c0_10, %c2] : memref<32x3xf32, #tpu.memory_space<vmem>>, vector<32x1xf32>
    %23 = vector.broadcast %22 : vector<32x1xf32> to vector<32x256xf32>
    %24 = arith.addf %21, %23 : vector<32x256xf32>
    %cst_11 = arith.constant 0.000000e+00 : f32
    %25 = vector.broadcast %cst_11 : f32 to vector<32x256xf32>
    %26 = arith.maximumf %24, %25 : vector<32x256xf32>
    %27 = arith.truncf %26 : vector<32x256xf32> to vector<32x256xbf16>
    %c0_12 = arith.constant 0 : index
    %c0_13 = arith.constant 0 : index
    %c0_14 = arith.constant 0 : index
    %28 = vector.load %arg4[%c0_12, %c0_13, %c0_14] : memref<1x32x256xbf16, #tpu.memory_space<vmem>>, vector<1x32x256xbf16>
    %29 = vector.shape_cast %28 : vector<1x32x256xbf16> to vector<32x256xbf16>
    %30 = vector.shape_cast %27 : vector<32x256xbf16> to vector<1x32x256xbf16>
    tpu.vector_store %arg4[%c0_12, %c0_13, %c0_14], %30 {strides = array<i32>} : memref<1x32x256xbf16, #tpu.memory_space<vmem>>, vector<1x32x256xbf16>,
    return
  }
  func.func @transform_0(%arg0: i32) -> (i32, i32, i32) {
    %c0_i32 = arith.constant 0 : i32
    %c0_i32_0 = arith.constant 0 : i32
    %c0_i32_1 = arith.constant 0 : i32
    return %arg0, %c0_i32, %c0_i32_0 : i32, i32, i32
  }
  func.func @transform_1(%arg0: i32) -> (i32, i32) {
    %c0_i32 = arith.constant 0 : i32
    %c0_i32_0 = arith.constant 0 : i32
    %c0_i32_1 = arith.constant 0 : i32
    return %c0_i32, %c0_i32_0 : i32, i32
  }
  func.func @transform_2(%arg0: i32) -> (i32, i32) {
    %c0_i32 = arith.constant 0 : i32
    %c0_i32_0 = arith.constant 0 : i32
    %c0_i32_1 = arith.constant 0 : i32
    return %c0_i32, %c0_i32_0 : i32, i32
  }
  func.func @transform_3(%arg0: i32) -> (i32, i32, i32) {
    %c0_i32 = arith.constant 0 : i32
    %c0_i32_0 = arith.constant 0 : i32
    %c0_i32_1 = arith.constant 0 : i32
    return %arg0, %c0_i32, %c0_i32_0 : i32, i32, i32
  }
}

</mosaic_0001>

<llo_original>
// kernel: tpu_custom_call.1
$region0: #{tpu_custom_call.1}
  #allocation0 [shape = 'u32[]', space=smem, size = 0x4, offset = 0x4, fixed_abs, tag = 'smem constant byte address 0x4 - core index']
  #allocation1 [shape = 'u32[144,128]{1,0:T(1,128)}', space=vmem, size = 0x12000, scoped, tag = 'internal scratch']
  %s0 = inlined_call_operand.hbm [shape: bf16[2,384,256], index: 0, kind: input, shape index: {}]
  %s1 = inlined_call_operand.hbm [shape: bf16[32,384], index: 1, kind: input, shape index: {}]
  %s2 = inlined_call_operand.vmem [shape: f32[32,3], index: 2, kind: input, shape index: {}]
  %s3 = inlined_call_operand.hbm [shape: bf16[2,32,256], index: 3, kind: output, shape index: {}]
  %s4 = sld [smem:[#allocation0]]
  $region53: #{tpu_custom_call.1} parent=0
    _
  %s6 = ssub.s32 1, %s4
  %s7 = scalar_select 0, %s6, %s4
  $region1: #{tpu_custom_call.1} parent=0
    #allocation2 [shape = 'u8[393216]{0}', space=vmem, size = 0x60000, scoped, tag = 'input window, operand 0']
    #allocation3 [shape = 's32[2]{0}', space=sflag, size = 0x8, scoped, tag = 'scoped memory for tpu_custom_call.1']
    #allocation4 [shape = 's32[2]{0}', space=sflag, size = 0x8, scoped, tag = 'scoped memory for tpu_custom_call.1']
    #allocation5 [shape = 'u8[24576]{0}', space=vmem, size = 0x6000, scoped, tag = 'input window, operand 1, single buffered']
    #allocation6 [shape = 's32[1]{0}', space=sflag, size = 0x4, scoped, tag = 'scoped memory for tpu_custom_call.1']
    #allocation7 [shape = 'u8[32768]{0}', space=vmem, size = 0x8000, scoped, tag = 'output window, operand 0']
    %8 = vsyncpa [#allocation3], 0
    %s9 = scalar_lea.sflag [#allocation3], 1
    %10 = vsyncpa %s9, 0
    %11 = vsyncpa [#allocation6], 0
    %12 = vsyncpa [#allocation4], 0
    %s13 = scalar_lea.sflag [#allocation4], 1
    %14 = vsyncpa %s13, 0
    loop: start=0, step=1, limit=4
    $region2: #{tpu_custom_call.1} parent=1 // loop_pre_header
      _
    $region3: #{tpu_custom_call.1} parent=1 // loop_header
      %s16 = sphi 0, %s20
      %p17 = scmp.ge.s32.totalorder %s16, 4
      %s26 = sphi 0, %s28
      %s29 = sphi 0, %s26
      %s30 = sphi 0, %s29
      %s46 = sphi 0, %s30
      %s50 = sphi 0, %s50
      %s52 = sphi 0, %s50
      %s53 = sphi 0, %s52
      %s67 = sphi 0, %s53
      %s71 = sphi 0, %s71
      %s73 = sphi 0, %s71
      %s74 = sphi 0, %s73
      %s88 = sphi 0, %s74
      %s94 = sphi 0, %s96
      %s97 = sphi 0, %s94
      %s98 = sphi 0, %s97
      %s114 = sphi 0, %s98
    $region4: #{tpu_custom_call.1} parent=1 // loop_header_branch
      %19 = sbr.rel (%p17) target = $region8
    $region5: #{tpu_custom_call.1} parent=1 // loop_body
      %s21 = ssub.s32 %s16, 1
      %s22 = ssub.s32 %s16, 2
      %s23 = sadd.s32 %s16, 1
      %s24 = ssub.s32 %s16, %s23
      %p25 = scmp.eq.s32.totalorder %s24, 0
      %s27 = sadd.s32 %s26, 1
      %s28 = scalar_select %p25, %s26, %s27
      %p31 = pneg %p25
      %p32 = scmp.eq.s32.totalorder %s16, 1
      %p33 = por %p31, %p32
      %p34 = scmp.ne.s32.totalorder %s26, %s29
      %p35 = scmp.eq.s32.totalorder %s16, 0
      %p36 = por %p34, %p35
      %p37 = scmp.ne.s32.totalorder %s26, %s29
      %p38 = scmp.eq.s32.totalorder %s21, 1
      %p39 = por %p37, %p38
      %p40 = scmp.ne.s32.totalorder %s29, %s30
      %p41 = scmp.eq.s32.totalorder %s21, 0
      %p42 = por %p40, %p41
      %p43 = scmp.ne.s32.totalorder %s29, %s30
      %p44 = scmp.eq.s32.totalorder %s22, 1
      %p45 = por %p43, %p44
      %p47 = scmp.ne.s32.totalorder %s30, %s46
      %p48 = scmp.eq.s32.totalorder %s22, 0
      %p49 = por %p47, %p48
      %s51 = sadd.s32 %s50, 1
      %p54 = scmp.eq.s32.totalorder %s16, 1
      %p55 = scmp.ne.s32.totalorder %s50, %s52
      %p56 = scmp.eq.s32.totalorder %s16, 0
      %p57 = por %p55, %p56
      %p58 = scmp.ne.s32.totalorder %s50, %s52
      %p59 = scmp.eq.s32.totalorder %s21, 1
      %p60 = por %p58, %p59
      %p61 = scmp.ne.s32.totalorder %s52, %s53
      %p62 = scmp.eq.s32.totalorder %s21, 0
      %p63 = por %p61, %p62
      %p64 = scmp.ne.s32.totalorder %s52, %s53
      %p65 = scmp.eq.s32.totalorder %s22, 1
      %p66 = por %p64, %p65
      %p68 = scmp.ne.s32.totalorder %s53, %s67
      %p69 = scmp.eq.s32.totalorder %s22, 0
      %p70 = por %p68, %p69
      %s72 = sadd.s32 %s71, 1
      %p75 = scmp.eq.s32.totalorder %s16, 1
      %p76 = scmp.ne.s32.totalorder %s71, %s73
      %p77 = scmp.eq.s32.totalorder %s16, 0
      %p78 = por %p76, %p77
      %p79 = scmp.ne.s32.totalorder %s71, %s73
      %p80 = scmp.eq.s32.totalorder %s21, 1
      %p81 = por %p79, %p80
      %p82 = scmp.ne.s32.totalorder %s73, %s74
      %p83 = scmp.eq.s32.totalorder %s21, 0
      %p84 = por %p82, %p83
      %p85 = scmp.ne.s32.totalorder %s73, %s74
      %p86 = scmp.eq.s32.totalorder %s22, 1
      %p87 = por %p85, %p86
      %p89 = scmp.ne.s32.totalorder %s74, %s88
      %p90 = scmp.eq.s32.totalorder %s22, 0
      %p91 = por %p89, %p90
      %s92 = ssub.s32 %s16, %s23
      %p93 = scmp.eq.s32.totalorder %s92, 0
      %s95 = sadd.s32 %s94, 1
      %s96 = scalar_select %p93, %s94, %s95
      %p99 = pneg %p93
      %p100 = scmp.eq.s32.totalorder %s16, 1
      %p101 = por %p99, %p100
      %p102 = scmp.ne.s32.totalorder %s94, %s97
      %p103 = scmp.eq.s32.totalorder %s16, 0
      %p104 = por %p102, %p103
      %p105 = scmp.ne.s32.totalorder %s94, %s97
      %p106 = scmp.eq.s32.totalorder %s21, 1
      %p107 = por %p105, %p106
      %p108 = scmp.ne.s32.totalorder %s97, %s98
      %p109 = scmp.eq.s32.totalorder %s21, 0
      %p110 = por %p108, %p109
      %p111 = scmp.ne.s32.totalorder %s97, %s98
      %p112 = scmp.eq.s32.totalorder %s22, 1
      %p113 = por %p111, %p112
      %p115 = scmp.ne.s32.totalorder %s98, %s114
      %p116 = scmp.eq.s32.totalorder %s22, 0
      %p117 = por %p115, %p116
      %p118 = scmp.le.s32.totalorder 1, %s16
      %p119 = scmp.lt.s32.totalorder %s16, 3
      %p120 = pnand %p118, %p119
      %p121 = pneg %p120
      // Predicated region
      $region9: #{tpu_custom_call.1} parent=5 // pred_check
        _
      $region10: #{tpu_custom_call.1} parent=5 // pred_check_branch
        %123 = sbr.rel (%p120) target = $region12
      $region11: #{tpu_custom_call.1} parent=5 // pred_region
        %s124 = ssub.s32 %s16, 1
        // Predicated region
        $region13: #{tpu_custom_call.1} parent=11 // pred_check
          %p125 = pneg %p63
        $region14: #{tpu_custom_call.1} parent=11 // pred_check_branch
          %127 = sbr.rel (%p125) target = $region16
        $region15: #{tpu_custom_call.1} parent=11 // pred_region
          %s129 = ssub.s32 768, 768
          %130 = vsyncadd [#allocation6], %s129
          %s131 = sshll.u32 [#allocation5], 4
          %s132 = int_to_ptr.vmem [resolvable:$true] %s131
          %137 = dma.hbm_to_vmem [thread:$0]  %s1, 768, %s132, [#allocation6], 192, 192, 12
        $region16: #{tpu_custom_call.1} parent=11 // pred_fallthru
          _
        // Predicated region
        $region17: #{tpu_custom_call.1} parent=11 // pred_check
          %p138 = pneg %p84
        $region18: #{tpu_custom_call.1} parent=11 // pred_check_branch
          %140 = sbr.rel (%p138) target = $region20
        $region19: #{tpu_custom_call.1} parent=11 // pred_region
          _
        $region20: #{tpu_custom_call.1} parent=11 // pred_fallthru
          _
      $region12: #{tpu_custom_call.1} parent=5 // pred_fallthru
        _
      %p141 = scmp.lt.s32.totalorder %s16, 2
      // Predicated region
      $region21: #{tpu_custom_call.1} parent=5 // pred_check
        %p142 = pneg %p141
      $region22: #{tpu_custom_call.1} parent=5 // pred_check_branch
        %144 = sbr.rel (%p142) target = $region24
      $region23: #{tpu_custom_call.1} parent=5 // pred_region
        // Predicated region
        $region25: #{tpu_custom_call.1} parent=23 // pred_check
          %p145 = pneg %p36
        $region26: #{tpu_custom_call.1} parent=23 // pred_check_branch
          %147 = sbr.rel (%p145) target = $region28
        $region27: #{tpu_custom_call.1} parent=23 // pred_region
          %s148 = sand.u32 %s26, 1
          %s149 = scalar_lea.sflag [#allocation3], %s148
          %s150 = sand.u32 %s26, 1
          %s151 = smul.addr %s150, 384
          %s152 = scalar_lea.vmem [#allocation2], %s151
          %s154 = ssub.s32 6144, 6144
          %155 = vsyncadd %s149, %s154
          %s156 = smul.addr %s16, 96
          %s157 = smul.addr %s156, 64
          %s158 = scalar_lea.hbm %s0, %s157
          %s159 = sshll.u32 %s152, 4
          %s160 = int_to_ptr.vmem [resolvable:$true] %s159
          %165 = dma.hbm_to_vmem [thread:$0]  %s158, 6144, %s160, %s149, 128, 128, 8
        $region28: #{tpu_custom_call.1} parent=23 // pred_fallthru
          _
      $region24: #{tpu_custom_call.1} parent=5 // pred_fallthru
        _
      %p166 = scmp.le.s32.totalorder 1, %s16
      %p167 = scmp.lt.s32.totalorder %s16, 3
      %p168 = pnand %p166, %p167
      %p169 = pneg %p168
      // Predicated region
      $region29: #{tpu_custom_call.1} parent=5 // pred_check
        _
      $region30: #{tpu_custom_call.1} parent=5 // pred_check_branch
        %171 = sbr.rel (%p168) target = $region32
      $region31: #{tpu_custom_call.1} parent=5 // pred_region
        %s172 = ssub.s32 %s16, 1
        %s173 = sand.u32 %s29, 1
        %s174 = scalar_lea.sflag [#allocation3], %s173
        %s175 = sand.u32 %s29, 1
        %s176 = smul.addr %s175, 384
        %s177 = scalar_lea.vmem [#allocation2], %s176
        // Predicated region
        $region33: #{tpu_custom_call.1} parent=31 // pred_check
          %p178 = pneg %p42
        $region34: #{tpu_custom_call.1} parent=31 // pred_check_branch
          %180 = sbr.rel (%p178) target = $region36
        $region35: #{tpu_custom_call.1} parent=31 // pred_region
          %181 = dma.done %s174, 6144
        $region36: #{tpu_custom_call.1} parent=31 // pred_fallthru
          _
        // Predicated region
        $region37: #{tpu_custom_call.1} parent=31 // pred_check
          %p182 = pneg %p63
        $region38: #{tpu_custom_call.1} parent=31 // pred_check_branch
          %184 = sbr.rel (%p182) target = $region40
        $region39: #{tpu_custom_call.1} parent=31 // pred_region
          %185 = dma.done [#allocation6], 768
        $region40: #{tpu_custom_call.1} parent=31 // pred_fallthru
          _
        %s186 = sand.u32 %s29, 1
        %s187 = scalar_lea.sflag [#allocation3], %s186
        %s188 = sand.u32 %s29, 1
        %s189 = smul.addr %s188, 384
        %s190 = scalar_lea.vmem [#allocation2], %s189
        %p191 = pneg %p42
        %p192 = pneg %p39
        %p193 = pneg %p63
        %p194 = pneg %p60
        %p195 = pneg %p84
        %p196 = pneg %p81
        %p197 = pneg %p110
        %p198 = pneg %p107
        %s199 = sand.u32 %s97, 1
        %s200 = scalar_lea.sflag [#allocation4], %s199
        %s201 = sand.u32 %s97, 1
        %s202 = smul.addr %s201, 32
        %s203 = scalar_lea.vmem [#allocation7], %s202
        %v205 = vld [vmem:[#allocation5] sm:$0xff]
        %v206 = vld [vmem:[#allocation5 + $0x8] sm:$0xf]
        %v207 = vld [vmem:[#allocation5 + $0xc] sm:$0xff]
        %v208 = vld [vmem:[#allocation5 + $0x14] sm:$0xf]
        %v209 = vld [vmem:[#allocation5 + $0x18] sm:$0xff]
        %v210 = vld [vmem:[#allocation5 + $0x20] sm:$0xf]
        %v211 = vld [vmem:[#allocation5 + $0x24] sm:$0xff]
        %v212 = vld [vmem:[#allocation5 + $0x2c] sm:$0xf]
        %v213 = vld [vmem:[%s177] sm:$0xff]
        %v214 = vld [vmem:[%s177 + $0x8] sm:$0xff]
        %v215 = vld [vmem:[%s177 + $0x10] sm:$0xff]
        %v216 = vld [vmem:[%s177 + $0x18] sm:$0xff]
        %v217 = vld [vmem:[%s177 + $0x20] sm:$0xff]
        %v218 = vld [vmem:[%s177 + $0x28] sm:$0xff]
        %v219 = vld [vmem:[%s177 + $0x30] sm:$0xff]
        %v220 = vld [vmem:[%s177 + $0x38] sm:$0xff]
        %v221 = vld [vmem:[%s177 + $0x40] sm:$0xff]
        %v222 = vld [vmem:[%s177 + $0x48] sm:$0xff]
        %v223 = vld [vmem:[%s177 + $0x50] sm:$0xff]
        %v224 = vld [vmem:[%s177 + $0x58] sm:$0xff]
        %v225 = vld [vmem:[%s177 + $0x60] sm:$0xff]
        %v226 = vld [vmem:[%s177 + $0x68] sm:$0xff]
        %v227 = vld [vmem:[%s177 + $0x70] sm:$0xff]
        %v228 = vld [vmem:[%s177 + $0x78] sm:$0xff]
        %v229 = vld [vmem:[%s177 + $0x80] sm:$0xff]
        %v230 = vld [vmem:[%s177 + $0x88] sm:$0xff]
        %v231 = vld [vmem:[%s177 + $0x90] sm:$0xff]
        %v232 = vld [vmem:[%s177 + $0x98] sm:$0xff]
        %v233 = vld [vmem:[%s177 + $0xa0] sm:$0xff]
        %v234 = vld [vmem:[%s177 + $0xa8] sm:$0xff]
        %v235 = vld [vmem:[%s177 + $0xb0] sm:$0xff]
        %v236 = vld [vmem:[%s177 + $0xb8] sm:$0xff]
        %v237 = vld [vmem:[%s177 + $0xc0] sm:$0xff]
        %v238 = vld [vmem:[%s177 + $0xc8] sm:$0xff]
        %v239 = vld [vmem:[%s177 + $0xd0] sm:$0xff]
        %v240 = vld [vmem:[%s177 + $0xd8] sm:$0xff]
        %v241 = vld [vmem:[%s177 + $0xe0] sm:$0xff]
        %v242 = vld [vmem:[%s177 + $0xe8] sm:$0xff]
        %v243 = vld [vmem:[%s177 + $0xf0] sm:$0xff]
        %v244 = vld [vmem:[%s177 + $0xf8] sm:$0xff]
        %v245 = vld [vmem:[%s177 + $0x100] sm:$0xff]
        %v246 = vld [vmem:[%s177 + $0x108] sm:$0xff]
        %v247 = vld [vmem:[%s177 + $0x110] sm:$0xff]
        %v248 = vld [vmem:[%s177 + $0x118] sm:$0xff]
        %v249 = vld [vmem:[%s177 + $0x120] sm:$0xff]
        %v250 = vld [vmem:[%s177 + $0x128] sm:$0xff]
        %v251 = vld [vmem:[%s177 + $0x130] sm:$0xff]
        %v252 = vld [vmem:[%s177 + $0x138] sm:$0xff]
        %v253 = vld [vmem:[%s177 + $0x140] sm:$0xff]
        %v254 = vld [vmem:[%s177 + $0x148] sm:$0xff]
        %v255 = vld [vmem:[%s177 + $0x150] sm:$0xff]
        %v256 = vld [vmem:[%s177 + $0x158] sm:$0xff]
        %v257 = vld [vmem:[%s177 + $0x160] sm:$0xff]
        %v258 = vld [vmem:[%s177 + $0x168] sm:$0xff]
        %v259 = vld [vmem:[%s177 + $0x170] sm:$0xff]
        %v260 = vld [vmem:[%s177 + $0x178] sm:$0xff]
        %v269 = vunpack.c.l.b16 %v205
        %v270 = vunpack.c.h.b16 %v205
        %v271 = vunpack.c.l.b16 %v206
        %v272 = vunpack.c.l.b16 %v207
        %v273 = vunpack.c.h.b16 %v207
        %v274 = vunpack.c.l.b16 %v208
        %v275 = vunpack.c.l.b16 %v209
        %v276 = vunpack.c.h.b16 %v209
        %v277 = vunpack.c.l.b16 %v210
        %v278 = vunpack.c.l.b16 %v211
        %v279 = vunpack.c.h.b16 %v211
        %v280 = vunpack.c.l.b16 %v212
        %v281 = vpack.c.b16 %v272, %v269
        %v282 = vpack.c.b16 %v273, %v270
        %v283 = vpack.c.b16 %v274, %v271
        %v284 = vpack.c.b16 %v278, %v275
        %v285 = vpack.c.b16 %v279, %v276
        %v286 = vpack.c.b16 %v280, %v277
        %v341 = vunpack.c.l.b16 %v213
        %v342 = vunpack.c.h.b16 %v213
        %v343 = vunpack.c.l.b16 %v214
        %v344 = vunpack.c.h.b16 %v214
        %v345 = vunpack.c.l.b16 %v215
        %v346 = vunpack.c.h.b16 %v215
        %v347 = vunpack.c.l.b16 %v216
        %v348 = vunpack.c.h.b16 %v216
        %v349 = vunpack.c.l.b16 %v217
        %v350 = vunpack.c.h.b16 %v217
        %v351 = vunpack.c.l.b16 %v218
        %v352 = vunpack.c.h.b16 %v218
        %v353 = vunpack.c.l.b16 %v219
        %v354 = vunpack.c.h.b16 %v219
        %v355 = vunpack.c.l.b16 %v220
        %v356 = vunpack.c.h.b16 %v220
        %v357 = vunpack.c.l.b16 %v221
        %v358 = vunpack.c.h.b16 %v221
        %v359 = vunpack.c.l.b16 %v222
        %v360 = vunpack.c.h.b16 %v222
        %v361 = vunpack.c.l.b16 %v223
        %v362 = vunpack.c.h.b16 %v223
        %v363 = vunpack.c.l.b16 %v224
        %v364 = vunpack.c.h.b16 %v224
        %v365 = vunpack.c.l.b16 %v225
        %v366 = vunpack.c.h.b16 %v225
        %v367 = vunpack.c.l.b16 %v226
        %v368 = vunpack.c.h.b16 %v226
        %v369 = vunpack.c.l.b16 %v227
        %v370 = vunpack.c.h.b16 %v227
        %v371 = vunpack.c.l.b16 %v228
        %v372 = vunpack.c.h.b16 %v228
        %v373 = vunpack.c.l.b16 %v229
        %v374 = vunpack.c.h.b16 %v229
        %v375 = vunpack.c.l.b16 %v230
        %v376 = vunpack.c.h.b16 %v230
        %v377 = vunpack.c.l.b16 %v231
        %v378 = vunpack.c.h.b16 %v231
        %v379 = vunpack.c.l.b16 %v232
        %v380 = vunpack.c.h.b16 %v232
        %v381 = vunpack.c.l.b16 %v233
        %v382 = vunpack.c.h.b16 %v233
        %v383 = vunpack.c.l.b16 %v234
        %v384 = vunpack.c.h.b16 %v234
        %v385 = vunpack.c.l.b16 %v235
        %v386 = vunpack.c.h.b16 %v235
        %v387 = vunpack.c.l.b16 %v236
        %v388 = vunpack.c.h.b16 %v236
        %v389 = vunpack.c.l.b16 %v237
        %v390 = vunpack.c.h.b16 %v237
        %v391 = vunpack.c.l.b16 %v238
        %v392 = vunpack.c.h.b16 %v238
        %v393 = vunpack.c.l.b16 %v239
        %v394 = vunpack.c.h.b16 %v239
        %v395 = vunpack.c.l.b16 %v240
        %v396 = vunpack.c.h.b16 %v240
        %v397 = vunpack.c.l.b16 %v241
        %v398 = vunpack.c.h.b16 %v241
        %v399 = vunpack.c.l.b16 %v242
        %v400 = vunpack.c.h.b16 %v242
        %v401 = vunpack.c.l.b16 %v243
        %v402 = vunpack.c.h.b16 %v243
        %v403 = vunpack.c.l.b16 %v244
        %v404 = vunpack.c.h.b16 %v244
        %v405 = vunpack.c.l.b16 %v245
        %v406 = vunpack.c.h.b16 %v245
        %v407 = vunpack.c.l.b16 %v246
        %v408 = vunpack.c.h.b16 %v246
        %v409 = vunpack.c.l.b16 %v247
        %v410 = vunpack.c.h.b16 %v247
        %v411 = vunpack.c.l.b16 %v248
        %v412 = vunpack.c.h.b16 %v248
        %v413 = vunpack.c.l.b16 %v249
        %v414 = vunpack.c.h.b16 %v249
        %v415 = vunpack.c.l.b16 %v250
        %v416 = vunpack.c.h.b16 %v250
        %v417 = vunpack.c.l.b16 %v251
        %v418 = vunpack.c.h.b16 %v251
        %v419 = vunpack.c.l.b16 %v252
        %v420 = vunpack.c.h.b16 %v252
        %v421 = vunpack.c.l.b16 %v253
        %v422 = vunpack.c.h.b16 %v253
        %v423 = vunpack.c.l.b16 %v254
        %v424 = vunpack.c.h.b16 %v254
        %v425 = vunpack.c.l.b16 %v255
        %v426 = vunpack.c.h.b16 %v255
        %v427 = vunpack.c.l.b16 %v256
        %v428 = vunpack.c.h.b16 %v256
        %v429 = vunpack.c.l.b16 %v257
        %v430 = vunpack.c.h.b16 %v257
        %v431 = vunpack.c.l.b16 %v258
        %v432 = vunpack.c.h.b16 %v258
        %v433 = vunpack.c.l.b16 %v259
        %v434 = vunpack.c.h.b16 %v259
        %v435 = vunpack.c.l.b16 %v260
        %v436 = vunpack.c.h.b16 %v260
        %v437 = vpack.c.b16 %v343, %v341
        %v438 = vpack.c.b16 %v344, %v342
        %v439 = vpack.c.b16 %v347, %v345
        %v440 = vpack.c.b16 %v348, %v346
        %v441 = vpack.c.b16 %v351, %v349
        %v442 = vpack.c.b16 %v352, %v350
        %v443 = vpack.c.b16 %v355, %v353
        %v444 = vpack.c.b16 %v356, %v354
        %v445 = vpack.c.b16 %v359, %v357
        %v446 = vpack.c.b16 %v360, %v358
        %v447 = vpack.c.b16 %v363, %v361
        %v448 = vpack.c.b16 %v364, %v362
        %v449 = vpack.c.b16 %v367, %v365
        %v450 = vpack.c.b16 %v368, %v366
        %v451 = vpack.c.b16 %v371, %v369
        %v452 = vpack.c.b16 %v372, %v370
        %v453 = vpack.c.b16 %v375, %v373
        %v454 = vpack.c.b16 %v376, %v374
        %v455 = vpack.c.b16 %v379, %v377
        %v456 = vpack.c.b16 %v380, %v378
        %v457 = vpack.c.b16 %v383, %v381
        %v458 = vpack.c.b16 %v384, %v382
        %v459 = vpack.c.b16 %v387, %v385
        %v460 = vpack.c.b16 %v388, %v386
        %v461 = vpack.c.b16 %v391, %v389
        %v462 = vpack.c.b16 %v392, %v390
        %v463 = vpack.c.b16 %v395, %v393
        %v464 = vpack.c.b16 %v396, %v394
        %v465 = vpack.c.b16 %v399, %v397
        %v466 = vpack.c.b16 %v400, %v398
        %v467 = vpack.c.b16 %v403, %v401
        %v468 = vpack.c.b16 %v404, %v402
        %v469 = vpack.c.b16 %v407, %v405
        %v470 = vpack.c.b16 %v408, %v406
        %v471 = vpack.c.b16 %v411, %v409
        %v472 = vpack.c.b16 %v412, %v410
        %v473 = vpack.c.b16 %v415, %v413
        %v474 = vpack.c.b16 %v416, %v414
        %v475 = vpack.c.b16 %v419, %v417
        %v476 = vpack.c.b16 %v420, %v418
        %v477 = vpack.c.b16 %v423, %v421
        %v478 = vpack.c.b16 %v424, %v422
        %v479 = vpack.c.b16 %v427, %v425
        %v480 = vpack.c.b16 %v428, %v426
        %v481 = vpack.c.b16 %v431, %v429
        %v482 = vpack.c.b16 %v432, %v430
        %v483 = vpack.c.b16 %v435, %v433
        %v484 = vpack.c.b16 %v436, %v434
        %533 = vmatprep.subr.bf16.mxu0 %v452
        %534 = vmatpush1.bf16.msra.mxu0 %v451
        %535 = vmatprep.subr.bf16.mxu0 %v450
        %536 = vmatpush1.bf16.msra.mxu0 %v449
        %537 = vmatprep.subr.bf16.mxu0 %v448
        %538 = vmatpush1.bf16.msra.mxu0 %v447
        %539 = vmatprep.subr.bf16.mxu0 %v446
        %540 = vmatpush1.bf16.msra.mxu0 %v445
        %541 = vmatprep.subr.bf16.mxu0 %v444
        %542 = vmatpush1.bf16.msra.mxu0 %v443
        %543 = vmatprep.subr.bf16.mxu0 %v442
        %544 = vmatpush1.bf16.msra.mxu0 %v441
        %545 = vmatprep.subr.bf16.mxu0 %v440
        %546 = vmatpush1.bf16.msra.mxu0 %v439
        %547 = vmatprep.subr.bf16.mxu0 %v438
        %548 = vmatpush1.bf16.msra.mxu0 %v437
        %549 = vmatprep.subr.bf16.mxu0 %v468
        %550 = vmatpush2.bf16.msra.mxu0 %v467
        %551 = vmatprep.subr.bf16.mxu0 %v466
        %552 = vmatpush2.bf16.msra.mxu0 %v465
        %553 = vmatprep.subr.bf16.mxu0 %v464
        %554 = vmatpush2.bf16.msra.mxu0 %v463
        %555 = vmatprep.subr.bf16.mxu0 %v462
        %556 = vmatpush2.bf16.msra.mxu0 %v461
        %557 = vmatprep.subr.bf16.mxu0 %v460
        %558 = vmatpush2.bf16.msra.mxu0 %v459
        %559 = vmatprep.subr.bf16.mxu0 %v458
        %560 = vmatpush2.bf16.msra.mxu0 %v457
        %561 = vmatprep.subr.bf16.mxu0 %v456
        %562 = vmatpush2.bf16.msra.mxu0 %v455
        %563 = vmatprep.subr.bf16.mxu0 %v454
        %564 = vmatpush2.bf16.msra.mxu0 %v453
        %565 = vmatprep.mubr.bf16.mxu0 %v282
        %566 = vmatmul.mubr.bf16.gmra.mxu0 %v281
        %v567 = vpop.f32.mrf.mxu0
        %v568 = vadd.f32 0.0, %v567
        %v569 = vpop.f32.mrf.mxu0
        %v570 = vadd.f32 0.0, %v569
        %v571 = vpop.f32.mrf.mxu0
        %v572 = vadd.f32 0.0, %v571
        %v573 = vpop.f32.mrf.mxu0
        %v574 = vadd.f32 0.0, %v573
        %575 = vmatprep.mubr.bf16.mxu0 %v285
        %576 = vmatmul.mubr.bf16.gmra.mxu0 %v284
        %v577 = vpop.f32.mrf.mxu0
        %v578 = vadd.f32 0.0, %v577
        %v579 = vpop.f32.mrf.mxu0
        %v580 = vadd.f32 0.0, %v579
        %v581 = vpop.f32.mrf.mxu0
        %v582 = vadd.f32 0.0, %v581
        %v583 = vpop.f32.mrf.mxu0
        %v584 = vadd.f32 0.0, %v583
        %585 = vdwg.mxu0
        %586 = vmatprep.subr.bf16.mxu0 %v484
        %587 = vmatpush1.bf16.msra.mxu0 %v483
        %588 = vmatprep.subr.bf16.mxu0 %v482
        %589 = vmatpush1.bf16.msra.mxu0 %v481
        %590 = vmatprep.subr.bf16.mxu0 %v480
        %591 = vmatpush1.bf16.msra.mxu0 %v479
        %592 = vmatprep.subr.bf16.mxu0 %v478
        %593 = vmatpush1.bf16.msra.mxu0 %v477
        %594 = vmatprep.subr.bf16.mxu0 %v476
        %595 = vmatpush1.bf16.msra.mxu0 %v475
        %596 = vmatprep.subr.bf16.mxu0 %v474
        %597 = vmatpush1.bf16.msra.mxu0 %v473
        %598 = vmatprep.subr.bf16.mxu0 %v472
        %599 = vmatpush1.bf16.msra.mxu0 %v471
        %600 = vmatprep.subr.bf16.mxu0 %v470
        %601 = vmatpush1.bf16.msra.mxu0 %v469
        %602 = vmatprep.subr.bf16.mxu0 0
        %603 = vmatpush2.bf16.msra.mxu0 0
        %604 = vmatprep.subr.bf16.mxu0 0
        %605 = vmatpush2.bf16.msra.mxu0 0
        %606 = vmatprep.subr.bf16.mxu0 0
        %607 = vmatpush2.bf16.msra.mxu0 0
        %608 = vmatprep.subr.bf16.mxu0 0
        %609 = vmatpush2.bf16.msra.mxu0 0
        %610 = vmatprep.subr.bf16.mxu0 0
        %611 = vmatpush2.bf16.msra.mxu0 0
        %612 = vmatprep.subr.bf16.mxu0 0
        %613 = vmatpush2.bf16.msra.mxu0 0
        %614 = vmatprep.subr.bf16.mxu0 0
        %615 = vmatpush2.bf16.msra.mxu0 0
        %616 = vmatprep.subr.bf16.mxu0 0
        %617 = vmatpush2.bf16.msra.mxu0 0
        %618 = vmatprep.mubr.bf16.mxu0 0
        %619 = vmatmul.mubr.bf16.gmra.mxu0 %v283
        %v620 = vpop.f32.mrf.mxu0
        %v621 = vadd.f32 %v568, %v620
        %v622 = vpop.f32.mrf.mxu0
        %v623 = vadd.f32 %v570, %v622
        %v624 = vpop.f32.mrf.mxu0
        %v625 = vadd.f32 %v572, %v624
        %v626 = vpop.f32.mrf.mxu0
        %v627 = vadd.f32 %v574, %v626
        %628 = vmatprep.mubr.bf16.mxu0 0
        %629 = vmatmul.mubr.bf16.gmra.mxu0 %v286
        %v630 = vpop.f32.mrf.mxu0
        %v631 = vadd.f32 %v578, %v630
        %v632 = vpop.f32.mrf.mxu0
        %v633 = vadd.f32 %v580, %v632
        %v634 = vpop.f32.mrf.mxu0
        %v635 = vadd.f32 %v582, %v634
        %v636 = vpop.f32.mrf.mxu0
        %v637 = vadd.f32 %v584, %v636
        %638 = vdwg.mxu0
        %v639 = vadd.f32 %v621, %v623
        %640 = vadd.xlane.f32.xlu0 %v639
        %v641 = vpop.xlane.xlu0 %640
        %v642 = vadd.f32 %v625, %v627
        %643 = vadd.xlane.f32.xlu0 %v642
        %v644 = vpop.xlane.xlu0 %643
        %v645 = vadd.f32 %v631, %v633
        %646 = vadd.xlane.f32.xlu0 %v645
        %v647 = vpop.xlane.xlu0 %646
        %v648 = vadd.f32 %v635, %v637
        %649 = vadd.xlane.f32.xlu0 %v648
        %v650 = vpop.xlane.xlu0 %649
        %v651 = vrcp.pop 256.0
        %v652 = vmul.f32 %v641, %v651
        %v653 = vmul.f32 %v644, %v651
        %v654 = vmul.f32 %v647, %v651
        %v655 = vmul.f32 %v650, %v651
        %v656 = vsub.f32 %v621, %v652
        %v657 = vsub.f32 %v623, %v652
        %v658 = vsub.f32 %v625, %v653
        %v659 = vsub.f32 %v627, %v653
        %v660 = vsub.f32 %v631, %v654
        %v661 = vsub.f32 %v633, %v654
        %v662 = vsub.f32 %v635, %v655
        %v663 = vsub.f32 %v637, %v655
        %v664 = vmul.f32 %v656, %v656
        %v665 = vmul.f32 %v657, %v657
        %v666 = vmul.f32 %v658, %v658
        %v667 = vmul.f32 %v659, %v659
        %v668 = vmul.f32 %v660, %v660
        %v669 = vmul.f32 %v661, %v661
        %v670 = vmul.f32 %v662, %v662
        %v671 = vmul.f32 %v663, %v663
        %v672 = vadd.f32 %v664, %v665
        %673 = vadd.xlane.f32.xlu0 %v672
        %v674 = vpop.xlane.xlu0 %673
        %v675 = vadd.f32 %v666, %v667
        %676 = vadd.xlane.f32.xlu0 %v675
        %v677 = vpop.xlane.xlu0 %676
        %v678 = vadd.f32 %v668, %v669
        %679 = vadd.xlane.f32.xlu0 %v678
        %v680 = vpop.xlane.xlu0 %679
        %v681 = vadd.f32 %v670, %v671
        %682 = vadd.xlane.f32.xlu0 %v681
        %v683 = vpop.xlane.xlu0 %682
        %v684 = vmul.f32 %v674, %v651
        %v685 = vmul.f32 %v677, %v651
        %v686 = vmul.f32 %v680, %v651
        %v687 = vmul.f32 %v683, %v651
        %v688 = vld [vmem:[%s2] sm:$0xff]
        %v689 = vld [vmem:[%s2 + $0x8] sm:$0xff]
        %v690 = vld [vmem:[%s2 + $0x10] sm:$0xff]
        %v691 = vld [vmem:[%s2 + $0x18] sm:$0xff]
        %v692 = vadd.f32 %v684, 1e-05
        %v693 = vadd.f32 %v685, 1e-05
        %v694 = vadd.f32 %v686, 1e-05
        %v695 = vadd.f32 %v687, 1e-05
        %v696 = vrsqrt.pop %v692
        %v697 = vrsqrt.pop %v693
        %v698 = vrsqrt.pop %v694
        %v699 = vrsqrt.pop %v695
        %v700 = vmul.f32 %v688, %v696
        %v701 = vmul.f32 %v689, %v697
        %v702 = vmul.f32 %v690, %v698
        %v703 = vmul.f32 %v691, %v699
        %705 = vset.pattern.permute.xlu0 1
        %706 = vperm.xlu0 %705, %v700
        %v707 = vpop.permute.xlu0 %706
        %710 = vset.pattern.permute.xlu0 1
        %711 = vperm.xlu0 %710, %v701
        %v712 = vpop.permute.xlu0 %711
        %715 = vset.pattern.permute.xlu0 1
        %716 = vperm.xlu0 %715, %v702
        %v717 = vpop.permute.xlu0 %716
        %720 = vset.pattern.permute.xlu0 1
        %721 = vperm.xlu0 %720, %v703
        %v722 = vpop.permute.xlu0 %721
        %v724 = vmul.f32 %v656, %v707
        %v725 = vmul.f32 %v657, %v707
        %v726 = vmul.f32 %v658, %v712
        %v727 = vmul.f32 %v659, %v712
        %v728 = vmul.f32 %v660, %v717
        %v729 = vmul.f32 %v661, %v717
        %v730 = vmul.f32 %v662, %v722
        %v731 = vmul.f32 %v663, %v722
        %733 = vset.pattern.permute.xlu0 2
        %734 = vperm.xlu0 %733, %v688
        %v735 = vpop.permute.xlu0 %734
        %738 = vset.pattern.permute.xlu0 2
        %739 = vperm.xlu0 %738, %v689
        %v740 = vpop.permute.xlu0 %739
        %743 = vset.pattern.permute.xlu0 2
        %744 = vperm.xlu0 %743, %v690
        %v745 = vpop.permute.xlu0 %744
        %748 = vset.pattern.permute.xlu0 2
        %749 = vperm.xlu0 %748, %v691
        %v750 = vpop.permute.xlu0 %749
        %v752 = vadd.f32 %v724, %v735
        %v753 = vadd.f32 %v725, %v735
        %v754 = vadd.f32 %v726, %v740
        %v755 = vadd.f32 %v727, %v740
        %v756 = vadd.f32 %v728, %v745
        %v757 = vadd.f32 %v729, %v745
        %v758 = vadd.f32 %v730, %v750
        %v759 = vadd.f32 %v731, %v750
        %v760 = vmax.f32 %v752, 0.0
        %v761 = vmax.f32 %v753, 0.0
        %v762 = vmax.f32 %v754, 0.0
        %v763 = vmax.f32 %v755, 0.0
        %v764 = vmax.f32 %v756, 0.0
        %v765 = vmax.f32 %v757, 0.0
        %v766 = vmax.f32 %v758, 0.0
        %v767 = vmax.f32 %v759, 0.0
        %v768 = vpack.c.bf16 %v762, %v760
        %v769 = vpack.c.bf16 %v763, %v761
        %v770 = vpack.c.bf16 %v766, %v764
        %v771 = vpack.c.bf16 %v767, %v765
        %v776 = vunpack.c.l.b16 %v768
        %v777 = vunpack.c.l.b16 %v769
        %v778 = vunpack.c.h.b16 %v768
        %v779 = vunpack.c.h.b16 %v769
        %v780 = vunpack.c.l.b16 %v770
        %v781 = vunpack.c.l.b16 %v771
        %v782 = vunpack.c.h.b16 %v770
        %v783 = vunpack.c.h.b16 %v771
        %v784 = vpack.c.b16 %v777, %v776
        %v785 = vpack.c.b16 %v779, %v778
        %v786 = vpack.c.b16 %v781, %v780
        %v787 = vpack.c.b16 %v783, %v782
        %792 = vst [vmem:[%s203] sm:$0xff] %v784
        %793 = vst [vmem:[%s203 + $0x8] sm:$0xff] %v785
        %794 = vst [vmem:[%s203 + $0x10] sm:$0xff] %v786
        %795 = vst [vmem:[%s203 + $0x18] sm:$0xff] %v787
        %s796 = sand.u32 %s97, 1
        %s797 = scalar_lea.sflag [#allocation4], %s796
        %s798 = sand.u32 %s97, 1
        %s799 = smul.addr %s798, 32
        %s800 = scalar_lea.vmem [#allocation7], %s799
        // Predicated region
        $region41: #{tpu_custom_call.1} parent=31 // pred_check
          %p801 = pneg %p107
        $region42: #{tpu_custom_call.1} parent=31 // pred_check_branch
          %803 = sbr.rel (%p801) target = $region44
        $region43: #{tpu_custom_call.1} parent=31 // pred_region
          %s805 = ssub.s32 512, 512
          %806 = vsyncadd %s797, %s805
          %s807 = smul.addr %s21, 8
          %s808 = smul.addr %s807, 64
          %s809 = scalar_lea.hbm %s3, %s808
          %s810 = sshll.u32 %s800, 4
          %s811 = int_to_ptr.vmem [resolvable:$true] %s810
          %816 = dma.vmem_to_hbm [thread:$0]  %s811, 512, %s809, %s797, 128, 128, 8
        $region44: #{tpu_custom_call.1} parent=31 // pred_fallthru
          _
      $region32: #{tpu_custom_call.1} parent=5 // pred_fallthru
        _
      %p817 = scmp.le.s32.totalorder 2, %s16
      // Predicated region
      $region45: #{tpu_custom_call.1} parent=5 // pred_check
        %p818 = pneg %p817
      $region46: #{tpu_custom_call.1} parent=5 // pred_check_branch
        %820 = sbr.rel (%p818) target = $region48
      $region47: #{tpu_custom_call.1} parent=5 // pred_region
        %s821 = ssub.s32 %s16, 2
        // Predicated region
        $region49: #{tpu_custom_call.1} parent=47 // pred_check
          %p822 = pneg %p113
        $region50: #{tpu_custom_call.1} parent=47 // pred_check_branch
          %824 = sbr.rel (%p822) target = $region52
        $region51: #{tpu_custom_call.1} parent=47 // pred_region
          %s825 = sand.u32 %s98, 1
          %s826 = scalar_lea.sflag [#allocation4], %s825
          %s827 = sand.u32 %s98, 1
          %s828 = smul.addr %s827, 32
          %s829 = scalar_lea.vmem [#allocation7], %s828
          %830 = dma.done %s826, 512
        $region52: #{tpu_custom_call.1} parent=47 // pred_fallthru
          _
      $region48: #{tpu_custom_call.1} parent=5 // pred_fallthru
        _
    $region6: #{tpu_custom_call.1} parent=1 // loop_footer
      %s20 = sadd.s32 1, %s16
    $region7: #{tpu_custom_call.1} parent=1 // loop_footer_branch
      %15 = sbr.rel target = $region3
    $region8: #{tpu_custom_call.1} parent=1 // loop_exit
      _
    %831 = vsyncpa [#allocation3], 1
    %s832 = scalar_lea.sflag [#allocation3], 1
    %833 = vsyncpa %s832, 1
    %834 = vsyncpa [#allocation6], 1
    %835 = vsyncpa [#allocation4], 1
    %s836 = scalar_lea.sflag [#allocation4], 1
    %837 = vsyncpa %s836, 1

</llo_original>
